<compile_context>
chip_gen: v7x
topology: tpu7x:2x2x1
jax: 0.10.0
libtpu: 0.0.40
codegen_flags: <defaults>
</compile_context>

<pallas_src>
import functools
import math

import jax
import jax.numpy as jnp
from jax.experimental import pallas as pl
from jax.experimental.pallas import tpu as pltpu


# bf16 feeds the MXU at full rate; accumulation stays f32.
MM_DTYPE = jnp.bfloat16
ACT_DTYPE = jnp.bfloat16      # streamed-activation storage dtype

# ---- generation-aware sizing -----------------------------------------------
_TPU_VMEM_BYTES = 128 * 1024 * 1024
try:  # trace-time hardware query; fall back gracefully if unavailable
    _TPU_VMEM_BYTES = int(pltpu.get_tpu_info().vmem_capacity_bytes)
except Exception:
    pass
# v7x has 64 MiB VMEM per TC -> smaller row tiles; v5e/v6e (128 MiB) -> 512.
_MAX_ROW_TILE = 256 if _TPU_VMEM_BYTES <= 64 * 1024 * 1024 else 512
_VMEM_CAP = int(0.75 * _TPU_VMEM_BYTES)


def _row_tile(M, max_tile=_MAX_ROW_TILE):
    """Largest row tile <= max_tile that divides M (full M when small)."""
    if M <= max_tile:
        return M
    t = (max_tile // 8) * 8
    while t >= 8:
        if M % t == 0:
            return t
        t -= 8
    return M


def _bytes(shape, dtype):
    return int(math.prod(shape)) * jnp.dtype(dtype).itemsize


def _compiler_params(block_bytes, semantics):
    """Explicit scoped-VMEM limit: double-buffered blocks + headroom, capped."""
    limit = 2 * int(block_bytes) + (2 << 20)
    limit = max(limit, 16 << 20)
    limit = min(limit, _VMEM_CAP)
    return pltpu.CompilerParams(dimension_semantics=semantics,
                                vmem_limit_bytes=int(limit))


# ----------------------------- Pallas kernels ------------------------------

def _gelu(y):
    # sigmoid-form GELU: 2 VALU ops + exp/recip on the EUP (free slot).
    s = pl.reciprocal(1.0 + jnp.exp(jnp.float32(-1.702) * y), approx=True)
    return y * s


def _linear_kernel(x_ref, w_ref, b_ref, o_ref, *, activation):
    x = x_ref[...].astype(MM_DTYPE)
    w = w_ref[...]                                  # already bf16
    y = jnp.dot(x, w, preferred_element_type=jnp.float32) + b_ref[...]
    if activation == "gelu":
        y = _gelu(y)
    o_ref[...] = y.astype(o_ref.dtype)


def linear(x, w, b, activation=None):
    """x:[M,K] @ w:[K,N] + b:[N], optional fused GELU. bf16 out, large tiles."""
    M, K = x.shape
    _, N = w.shape
    tm = _row_tile(M)
    kernel = functools.partial(_linear_kernel, activation=activation)
    ce = pl.CostEstimate(flops=2 * M * K * N,
                         transcendentals=(M * N if activation == "gelu" else 0),
                         bytes_accessed=_bytes((M, K), x.dtype)
                         + _bytes((K, N), w.dtype) + _bytes((M, N), ACT_DTYPE))
    blk = (_bytes((tm, K), x.dtype) + _bytes((K, N), w.dtype)
           + _bytes((1, N), jnp.float32) + _bytes((tm, N), ACT_DTYPE))
    return pl.pallas_call(
        kernel,
        out_shape=jax.ShapeDtypeStruct((M, N), ACT_DTYPE),
        grid=(M // tm,),
        in_specs=[
            pl.BlockSpec((tm, K), lambda i: (i, 0)),
            pl.BlockSpec((K, N), lambda i: (0, 0)),
            pl.BlockSpec((1, N), lambda i: (0, 0)),
        ],
        out_specs=pl.BlockSpec((tm, N), lambda i: (i, 0)),
        compiler_params=_compiler_params(blk, ("parallel",)),
        cost_estimate=ce,
    )(x, w, b.reshape(1, N))


def _ln_kernel(x_ref, g_ref, b_ref, o_ref, *, eps):
    y = x_ref[...].astype(jnp.float32)
    mean = jnp.mean(y, axis=-1, keepdims=True)
    c = y - mean
    var = jnp.mean(c * c, axis=-1, keepdims=True)
    o_ref[...] = (c * jax.lax.rsqrt(var + eps) * g_ref[...]
                  + b_ref[...]).astype(o_ref.dtype)


def layernorm(x, gamma, beta, eps=1e-12):
    """LayerNorm over last dim; bf16 output for the downstream stream."""
    M, H = x.shape
    tm = _row_tile(M)
    kernel = functools.partial(_ln_kernel, eps=eps)
    blk = (_bytes((tm, H), x.dtype) + 2 * _bytes((1, H), jnp.float32)
           + _bytes((tm, H), ACT_DTYPE))
    return pl.pallas_call(
        kernel,
        out_shape=jax.ShapeDtypeStruct((M, H), ACT_DTYPE),
        grid=(M // tm,),
        in_specs=[
            pl.BlockSpec((tm, H), lambda i: (i, 0)),
            pl.BlockSpec((1, H), lambda i: (0, 0)),
            pl.BlockSpec((1, H), lambda i: (0, 0)),
        ],
        out_specs=pl.BlockSpec((tm, H), lambda i: (i, 0)),
        compiler_params=_compiler_params(blk, ("parallel",)),
    )(x, gamma.reshape(1, H), beta.reshape(1, H))


def _matmul_add_ln_kernel(x_ref, w_ref, b_ref, r_ref, g_ref, bt_ref, o_ref, *, eps):
    x = x_ref[...].astype(MM_DTYPE)
    w = w_ref[...]                                  # already bf16
    y = jnp.dot(x, w, preferred_element_type=jnp.float32) + b_ref[...]
    y = y + r_ref[...].astype(jnp.float32)          # residual (bf16 stream)
    mean = jnp.mean(y, axis=-1, keepdims=True)
    c = y - mean
    var = jnp.mean(c * c, axis=-1, keepdims=True)
    o_ref[...] = (c * jax.lax.rsqrt(var + eps) * g_ref[...]
                  + bt_ref[...]).astype(o_ref.dtype)


def matmul_add_layernorm(x, w, b, resid, gamma, beta, eps=1e-12):
    """LayerNorm((x @ w + b) + resid): fused projection + residual + post-LN."""
    M, K = x.shape
    _, N = w.shape
    tm = _row_tile(M)
    kernel = functools.partial(_matmul_add_ln_kernel, eps=eps)
    ce = pl.CostEstimate(flops=2 * M * K * N, transcendentals=0,
                         bytes_accessed=_bytes((M, K), x.dtype)
                         + _bytes((K, N), w.dtype)
                         + 2 * _bytes((M, N), ACT_DTYPE))
    blk = (_bytes((tm, K), x.dtype) + _bytes((K, N), w.dtype)
           + 3 * _bytes((1, N), jnp.float32)
           + 2 * _bytes((tm, N), ACT_DTYPE))
    return pl.pallas_call(
        kernel,
        out_shape=jax.ShapeDtypeStruct((M, N), ACT_DTYPE),
        grid=(M // tm,),
        in_specs=[
            pl.BlockSpec((tm, K), lambda i: (i, 0)),
            pl.BlockSpec((K, N), lambda i: (0, 0)),
            pl.BlockSpec((1, N), lambda i: (0, 0)),
            pl.BlockSpec((tm, N), lambda i: (i, 0)),
            pl.BlockSpec((1, N), lambda i: (0, 0)),
            pl.BlockSpec((1, N), lambda i: (0, 0)),
        ],
        out_specs=pl.BlockSpec((tm, N), lambda i: (i, 0)),
        compiler_params=_compiler_params(blk, ("parallel",)),
        cost_estimate=ce,
    )(x, w, b.reshape(1, N), resid, gamma.reshape(1, N), beta.reshape(1, N))


def _attention_kernel(x_ref, wqkv_ref, bqkv_ref, bias_ref, o_ref, *, nh, d, scale):
    # Fused QKV projection (w_qkv resident in VMEM) + all heads of one batch
    # element per grid step; per-head context stored directly into o_ref.
    x = x_ref[0].astype(MM_DTYPE)                       # (S, H)
    qkv = jnp.dot(x, wqkv_ref[...],
                  preferred_element_type=jnp.float32) + bqkv_ref[...]  # (S, 3H) f32
    bias = bias_ref[0]                                  # (1, S) additive mask
    H = nh * d
    for h in range(nh):                                 # static unroll
        q = qkv[:, h * d:(h + 1) * d].astype(MM_DTYPE)
        k = qkv[:, H + h * d:H + (h + 1) * d].astype(MM_DTYPE)
        v = qkv[:, 2 * H + h * d:2 * H + (h + 1) * d].astype(MM_DTYPE)
        s = jax.lax.dot_general(q, k, (((1,), (1,)), ((), ())),
                                preferred_element_type=jnp.float32)
        s = s * scale + bias
        m = jnp.max(s, axis=-1, keepdims=True)
        p = jnp.exp(s - m)
        p = p * pl.reciprocal(jnp.sum(p, axis=-1, keepdims=True), approx=True)
        ctx = jnp.dot(p.astype(MM_DTYPE), v, preferred_element_type=jnp.float32)
        # direct per-head store: no outs list / jnp.concatenate at the end
        o_ref[0, :, h * d:(h + 1) * d] = ctx.astype(o_ref.dtype)
        # TODO(synk): for d=64 production heads, pack 2 heads per 128-lane
        # slice/store so all loads/stores stay lane-tile aligned.


def attention(x, w_qkv, b_qkv, bias, nh, d):
    """x: [B,S,H] bf16; w_qkv: [H,3H] bf16; bias: [B,1,S]. Fused QKV+attention."""
    B, S, H = x.shape
    H3 = 3 * H
    kernel = functools.partial(_attention_kernel, nh=nh, d=d,
                               scale=1.0 / math.sqrt(d))
    ce = pl.CostEstimate(
        flops=2 * B * S * H * H3 + 4 * B * nh * S * S * d,
        transcendentals=B * nh * S * S,
        bytes_accessed=2 * _bytes((B, S, H), ACT_DTYPE) + _bytes((H, H3), MM_DTYPE))
    blk = (_bytes((1, S, H), ACT_DTYPE) + _bytes((H, H3), MM_DTYPE)
           + _bytes((1, H3), jnp.float32) + _bytes((1, 1, S), jnp.float32)
           + _bytes((1, S, H), ACT_DTYPE) + _bytes((S, H3), jnp.float32))
    return pl.pallas_call(
        kernel,
        out_shape=jax.ShapeDtypeStruct((B, S, H), ACT_DTYPE),
        grid=(B,),
        in_specs=[
            pl.BlockSpec((1, S, H), lambda b: (b, 0, 0)),
            pl.BlockSpec((H, H3), lambda b: (0, 0)),
            pl.BlockSpec((1, H3), lambda b: (0, 0)),
            pl.BlockSpec((1, 1, S), lambda b: (b, 0, 0)),
        ],
        out_specs=pl.BlockSpec((1, S, H), lambda b: (b, 0, 0)),
        compiler_params=_compiler_params(blk, ("parallel",)),
        cost_estimate=ce,
    )(x, w_qkv, b_qkv.reshape(1, H3), bias)


def _pool_kernel(h_ref, m_ref, o_ref):
    h = h_ref[0].astype(MM_DTYPE)   # (S, H) bf16 stream
    m = m_ref[0]                    # (1, S) f32 mask
    # MXU matmul (1,S)@(S,H) instead of an XLU row reduction.
    num = jnp.dot(m.astype(MM_DTYPE), h, preferred_element_type=jnp.float32)
    den = jnp.maximum(jnp.sum(m, axis=-1, keepdims=True), 1e-9)
    o_ref[0] = num * pl.reciprocal(den, approx=True)


def masked_mean_pool(hidden, mask_f):
    """hidden: [B,S,H] bf16; mask_f: [B,S] f32 -> [B,H] f32 mean over valid tokens."""
    B, S, H = hidden.shape
    m = mask_f.reshape(B, 1, S)
    blk = (_bytes((1, S, H), hidden.dtype) + _bytes((1, 1, S), jnp.float32)
           + _bytes((1, 1, H), jnp.float32))
    out = pl.pallas_call(
        _pool_kernel,
        out_shape=jax.ShapeDtypeStruct((B, 1, H), jnp.float32),
        grid=(B,),
        in_specs=[
            pl.BlockSpec((1, S, H), lambda b: (b, 0, 0)),
            pl.BlockSpec((1, 1, S), lambda b: (b, 0, 0)),
        ],
        out_specs=pl.BlockSpec((1, 1, H), lambda b: (b, 0, 0)),
        compiler_params=_compiler_params(blk, ("parallel",)),
    )(hidden, m)
    return out.reshape(B, H)


# --------------------------- model (glue in JAX) ---------------------------

def init_params(key, *, vocab=100, max_pos=32, type_vocab=2,
                hidden=32, n_layers=2, n_heads=2, ffn=64):
    std = 0.02
    keys = iter(jax.random.split(key, 8 + 10 * n_layers))

    def nrm(shape):
        return (std * jax.random.normal(next(keys), shape)).astype(jnp.float32)

    params = {
        "config": {"hidden": hidden, "n_heads": n_heads, "n_layers": n_layers},
        "word_emb": nrm((vocab, hidden)),
        "pos_emb": nrm((max_pos, hidden)),
        "type_emb": nrm((type_vocab, hidden)),
        "emb_ln_g": jnp.ones((hidden,), jnp.float32),
        "emb_ln_b": jnp.zeros((hidden,), jnp.float32),
        "layers": [],
    }
    for _ in range(n_layers):
        wq, wk, wv = nrm((hidden, hidden)), nrm((hidden, hidden)), nrm((hidden, hidden))
        params["layers"].append({
            # fused QKV projection, pre-cast to bf16 (resident weight, half DMA)
            "w_qkv": jnp.concatenate([wq, wk, wv], axis=1).astype(MM_DTYPE),
            "b_qkv": jnp.zeros((3 * hidden,), jnp.float32),
            "wo": nrm((hidden, hidden)).astype(MM_DTYPE),
            "bo": jnp.zeros((hidden,), jnp.float32),
            "ln1_g": jnp.ones((hidden,), jnp.float32),
            "ln1_b": jnp.zeros((hidden,), jnp.float32),
            "w1": nrm((hidden, ffn)).astype(MM_DTYPE),
            "b1": jnp.zeros((ffn,), jnp.float32),
            "w2": nrm((ffn, hidden)).astype(MM_DTYPE),
            "b2": jnp.zeros((hidden,), jnp.float32),
            "ln2_g": jnp.ones((hidden,), jnp.float32),
            "ln2_b": jnp.zeros((hidden,), jnp.float32),
        })
    return params


def sentence_transformer_forward(params, input_ids, attention_mask,
                                 token_type_ids, position_ids):
    cfg = params["config"]
    H, NH = cfg["hidden"], cfg["n_heads"]
    D = H // NH
    B, S = input_ids.shape

    # Pad sequence length to a multiple of 8 so every row-tiled block stays
    # sublane aligned; padded tokens carry mask=0 and are excluded everywhere.
    S_pad = ((S + 7) // 8) * 8
    if S_pad != S:
        pad = ((0, 0), (0, S_pad - S))
        input_ids = jnp.pad(input_ids, pad)
        attention_mask = jnp.pad(attention_mask, pad)
        token_type_ids = jnp.pad(token_type_ids, pad)
        position_ids = jnp.pad(position_ids, pad)
    S = S_pad

    # Embedding lookup (gather) is glue in plain JAX.
    # BERT path of the wrapper: token_type_ids are consumed (DistilBERT would drop them).
    emb = (params["word_emb"][input_ids]
           + params["pos_emb"][position_ids]
           + params["type_emb"][token_type_ids]).astype(jnp.float32)
    x = layernorm(emb.reshape(B * S, H), params["emb_ln_g"], params["emb_ln_b"])

    mask_f = attention_mask.astype(jnp.float32)
    attn_bias = ((1.0 - mask_f) * jnp.float32(-1e9)).reshape(B, 1, S)

    for lp in params["layers"]:
        # fused QKV projection + all-heads attention, one pallas_call
        ctx = attention(x.reshape(B, S, H), lp["w_qkv"], lp["b_qkv"],
                        attn_bias, NH, D)                      # [B, S, H] bf16
        ctx = ctx.reshape(B * S, H)                            # no transposes
        x = matmul_add_layernorm(ctx, lp["wo"], lp["bo"], x,
                                 lp["ln1_g"], lp["ln1_b"])
        ff = linear(x, lp["w1"], lp["b1"], activation="gelu")  # bf16 stream
        x = matmul_add_layernorm(ff, lp["w2"], lp["b2"], x,
                                 lp["ln2_g"], lp["ln2_b"])

    hidden = x.reshape(B, S, H)
    sentence_embedding = masked_mean_pool(hidden, mask_f)
    # TODO(synk): some sentence-transformers checkpoints append a Normalize
    # module after Pooling; it is checkpoint-dependent and omitted here.
    return sentence_embedding


# --------------------------------- driver ----------------------------------

if __name__ == "__main__":
    B, S, H, NH, FFN, VOCAB = 2, 8, 32, 2, 64, 100

    key = jax.random.PRNGKey(0)
    k_param, k_ids = jax.random.split(key)
    params = init_params(k_param, vocab=VOCAB, max_pos=32, type_vocab=2,
                         hidden=H, n_layers=2, n_heads=NH, ffn=FFN)

    input_ids = jax.random.randint(k_ids, (B, S), 0, VOCAB, dtype=jnp.int32)
    attention_mask = jnp.array([[1, 1, 1, 1, 1, 1, 0, 0],
                                [1, 1, 1, 1, 0, 0, 0, 0]], dtype=jnp.int32)
    token_type_ids = jnp.zeros((B, S), dtype=jnp.int32)
    position_ids = jnp.broadcast_to(jnp.arange(S, dtype=jnp.int32), (B, S))

    emb = sentence_transformer_forward(params, input_ids, attention_mask,
                                       token_type_ids, position_ids)
    emb = jax.block_until_ready(emb)

    assert emb.shape == (B, H) and emb.dtype == jnp.float32
    assert bool(jnp.all(jnp.isfinite(emb)))
    print("KERNEL_OK")
</pallas_src>

<mosaic_0001>
module attributes {stable_mosaic.version = 11 : i64} {
  func.func @_ln_kernel(%arg0: i32, %arg1: memref<16x32xf32, #tpu.memory_space<vmem>>, %arg2: memref<1x32xf32, #tpu.memory_space<vmem>>, %arg3: memref<1x32xf32, #tpu.memory_space<vmem>>, %arg4: memref<16x32xbf16, #tpu.memory_space<vmem>>) attributes {dimension_semantics = [#tpu.dimension_semantics<parallel>], iteration_bounds = array<i64: 1>, scalar_prefetch = 0 : i64, scratch_operands = 0 : i64, tpu.core_type = #tpu.core_type<tc>, window_params = [{transform_indices = @transform_0, window_bounds = array<i64: 16, 32>}, {pipeline_mode = #tpu.pipeline_mode<synchronous>, transform_indices = @transform_1, window_bounds = array<i64: 1, 32>}, {pipeline_mode = #tpu.pipeline_mode<synchronous>, transform_indices = @transform_2, window_bounds = array<i64: 1, 32>}, {transform_indices = @transform_3, window_bounds = array<i64: 16, 32>}]} {
    %c0 = arith.constant 0 : index
    %c0_0 = arith.constant 0 : index
    %0 = vector.load %arg1[%c0, %c0_0] : memref<16x32xf32, #tpu.memory_space<vmem>>, vector<16x32xf32>
    %cst = arith.constant dense<0.000000e+00> : vector<16xf32>
    %1 = vector.multi_reduction <add>, %0, %cst [1] : vector<16x32xf32> to vector<16xf32>
    %2 = vector.shape_cast %1 : vector<16xf32> to vector<16x1xf32>
    %cst_1 = arith.constant 3.200000e+01 : f32
    %3 = vector.broadcast %cst_1 : f32 to vector<16x1xf32>
    %4 = arith.divf %2, %3 : vector<16x1xf32>
    %5 = vector.broadcast %4 : vector<16x1xf32> to vector<16x32xf32>
    %6 = arith.subf %0, %5 : vector<16x32xf32>
    %7 = arith.mulf %6, %6 : vector<16x32xf32>
    %cst_2 = arith.constant dense<0.000000e+00> : vector<16xf32>
    %8 = vector.multi_reduction <add>, %7, %cst_2 [1] : vector<16x32xf32> to vector<16xf32>
    %9 = vector.shape_cast %8 : vector<16xf32> to vector<16x1xf32>
    %cst_3 = arith.constant 3.200000e+01 : f32
    %10 = vector.broadcast %cst_3 : f32 to vector<16x1xf32>
    %11 = arith.divf %9, %10 : vector<16x1xf32>
    %cst_4 = arith.constant 9.99999996E-13 : f32
    %12 = vector.broadcast %cst_4 : f32 to vector<16x1xf32>
    %13 = arith.addf %11, %12 : vector<16x1xf32>
    %14 = math.rsqrt %13 : vector<16x1xf32>
    %15 = vector.broadcast %14 : vector<16x1xf32> to vector<16x32xf32>
    %16 = arith.mulf %6, %15 : vector<16x32xf32>
    %c0_5 = arith.constant 0 : index
    %c0_6 = arith.constant 0 : index
    %17 = vector.load %arg2[%c0_5, %c0_6] : memref<1x32xf32, #tpu.memory_space<vmem>>, vector<1x32xf32>
    %18 = vector.broadcast %17 : vector<1x32xf32> to vector<16x32xf32>
    %19 = arith.mulf %16, %18 : vector<16x32xf32>
    %c0_7 = arith.constant 0 : index
    %c0_8 = arith.constant 0 : index
    %20 = vector.load %arg3[%c0_7, %c0_8] : memref<1x32xf32, #tpu.memory_space<vmem>>, vector<1x32xf32>
    %21 = vector.broadcast %20 : vector<1x32xf32> to vector<16x32xf32>
    %22 = arith.addf %19, %21 : vector<16x32xf32>
    %23 = arith.truncf %22 : vector<16x32xf32> to vector<16x32xbf16>
    %c0_9 = arith.constant 0 : index
    %c0_10 = arith.constant 0 : index
    %24 = vector.load %arg4[%c0_9, %c0_10] : memref<16x32xbf16, #tpu.memory_space<vmem>>, vector<16x32xbf16>
    tpu.vector_store %arg4[%c0_9, %c0_10], %23 {strides = array<i32>} : memref<16x32xbf16, #tpu.memory_space<vmem>>, vector<16x32xbf16>,
    return
  }
  func.func @transform_0(%arg0: i32) -> (i32, i32) {
    %c0_i32 = arith.constant 0 : i32
    %c0_i32_0 = arith.constant 0 : i32
    return %arg0, %c0_i32 : i32, i32
  }
  func.func @transform_1(%arg0: i32) -> (i32, i32) {
    %c0_i32 = arith.constant 0 : i32
    %c0_i32_0 = arith.constant 0 : i32
    %c0_i32_1 = arith.constant 0 : i32
    return %c0_i32, %c0_i32_0 : i32, i32
  }
  func.func @transform_2(%arg0: i32) -> (i32, i32) {
    %c0_i32 = arith.constant 0 : i32
    %c0_i32_0 = arith.constant 0 : i32
    %c0_i32_1 = arith.constant 0 : i32
    return %c0_i32, %c0_i32_0 : i32, i32
  }
  func.func @transform_3(%arg0: i32) -> (i32, i32) {
    %c0_i32 = arith.constant 0 : i32
    %c0_i32_0 = arith.constant 0 : i32
    return %arg0, %c0_i32 : i32, i32
  }
}

</mosaic_0001>

<llo_original>
// kernel: tpu_custom_call.1
$region0: #{tpu_custom_call.1}
  #allocation0 [shape = 'u32[]', space=smem, size = 0x4, offset = 0x4, fixed_abs, tag = 'smem constant byte address 0x4 - core index']
  #allocation1 [shape = 'u32[144,128]{1,0:T(1,128)}', space=vmem, size = 0x12000, scoped, tag = 'internal scratch']
  %s0 = inlined_call_operand.hbm [shape: f32[16,32], index: 0, kind: input, shape index: {}]
  %s1 = inlined_call_operand.vmem [shape: f32[1,32], index: 1, kind: input, shape index: {}]
  %s2 = inlined_call_operand.vmem [shape: f32[1,32], index: 2, kind: input, shape index: {}]
  %s3 = inlined_call_operand.hbm [shape: bf16[16,32], index: 3, kind: output, shape index: {}]
  %s4 = sld [smem:[#allocation0]]
  $region26: #{tpu_custom_call.1} parent=0
    _
  %s6 = ssub.s32 1, %s4
  %s7 = scalar_select 0, %s6, %s4
  $region1: #{tpu_custom_call.1} parent=0
    #allocation2 [shape = 'u8[8192]{0}', space=vmem, size = 0x2000, scoped, tag = 'input window, operand 0, single buffered']
    #allocation3 [shape = 's32[1]{0}', space=sflag, size = 0x4, scoped, tag = 'scoped memory for tpu_custom_call.1']
    #allocation4 [shape = 's32[1]{0}', space=sflag, size = 0x4, scoped, tag = 'scoped memory for tpu_custom_call.1']
    #allocation5 [shape = 'u8[4096]{0}', space=vmem, size = 0x1000, scoped, tag = 'output window, operand 0, single buffered']
    %8 = vsyncpa [#allocation3], 0
    %9 = vsyncpa [#allocation4], 0
    // Predicated region
    $region2: #{tpu_custom_call.1} parent=1 // pred_check
      _
    $region3: #{tpu_custom_call.1} parent=1 // pred_check_branch
      %11 = sbr.rel (0) target = $region5
    $region4: #{tpu_custom_call.1} parent=1 // pred_region
      %s13 = ssub.s32 256, 256
      %14 = vsyncadd [#allocation3], %s13
      %s15 = sshll.u32 [#allocation2], 4
      %s16 = int_to_ptr.vmem [resolvable:$true] %s15
      %21 = dma.hbm_to_vmem [thread:$0]  %s0, 256, %s16, [#allocation3], 128, 128, 8
    $region5: #{tpu_custom_call.1} parent=1 // pred_fallthru
      _
    // Predicated region
    $region6: #{tpu_custom_call.1} parent=1 // pred_check
      _
    $region7: #{tpu_custom_call.1} parent=1 // pred_check_branch
      %23 = sbr.rel (0) target = $region9
    $region8: #{tpu_custom_call.1} parent=1 // pred_region
      _
    $region9: #{tpu_custom_call.1} parent=1 // pred_fallthru
      _
    // Predicated region
    $region10: #{tpu_custom_call.1} parent=1 // pred_check
      _
    $region11: #{tpu_custom_call.1} parent=1 // pred_check_branch
      %25 = sbr.rel (0) target = $region13
    $region12: #{tpu_custom_call.1} parent=1 // pred_region
      _
    $region13: #{tpu_custom_call.1} parent=1 // pred_fallthru
      _
    // Predicated region
    $region14: #{tpu_custom_call.1} parent=1 // pred_check
      _
    $region15: #{tpu_custom_call.1} parent=1 // pred_check_branch
      %27 = sbr.rel (0) target = $region17
    $region16: #{tpu_custom_call.1} parent=1 // pred_region
      %28 = dma.done [#allocation3], 256
    $region17: #{tpu_custom_call.1} parent=1 // pred_fallthru
      _
    %v29 = vld [vmem:[#allocation2] sm:$0xff]
    %v30 = vld [vmem:[#allocation2 + $0x8] sm:$0xff]
    %vm31 = vcmask 261120
    %v32 = vsel %vm31, %v29, 0.0
    %33 = vadd.xlane.f32.xlu0 %v32
    %v34 = vpop.xlane.xlu0 %33
    %v35 = vsel %vm31, %v30, 0.0
    %36 = vadd.xlane.f32.xlu0 %v35
    %v37 = vpop.xlane.xlu0 %36
    %v38 = vrcp.pop 32.0
    %v39 = vmul.f32 %v34, %v38
    %v40 = vmul.f32 %v37, %v38
    %v41 = vsub.f32 %v29, %v39
    %v42 = vsub.f32 %v30, %v40
    %v43 = vmul.f32 %v41, %v41
    %v44 = vmul.f32 %v42, %v42
    %v45 = vsel %vm31, %v43, 0.0
    %46 = vadd.xlane.f32.xlu0 %v45
    %v47 = vpop.xlane.xlu0 %46
    %v48 = vsel %vm31, %v44, 0.0
    %49 = vadd.xlane.f32.xlu0 %v48
    %v50 = vpop.xlane.xlu0 %49
    %v51 = vmul.f32 %v47, %v38
    %v52 = vmul.f32 %v50, %v38
    %v53 = vadd.f32 %v51, 1e-12
    %v54 = vadd.f32 %v52, 1e-12
    %v55 = vrsqrt.pop %v53
    %v56 = vrsqrt.pop %v54
    %v57 = vmul.f32 %v41, %v55
    %v58 = vmul.f32 %v42, %v56
    %v59 = vld [vmem:[%s1] sm:$0x1]
    %v61 = vlaneseq
    %v62 = vshrl.u32 %v61, 7
    %v63 = vsub.s32 0, %v62
    %v64 = vrot.slane %v59, %v63
    %v66 = vmul.f32 %v57, %v64
    %v67 = vmul.f32 %v58, %v64
    %v68 = vld [vmem:[%s2] sm:$0x1]
    %v70 = vlaneseq
    %v71 = vshrl.u32 %v70, 7
    %v72 = vsub.s32 0, %v71
    %v73 = vrot.slane %v68, %v72
    %v75 = vadd.f32 %v66, %v73
    %v76 = vadd.f32 %v67, %v73
    %v77 = vpack.c.bf16 %v76, %v75
    %v79 = vunpack.c.l.b16 %v77
    %v80 = vunpack.c.h.b16 %v77
    %v81 = vpack.c.b16 %v79, %v79
    %v82 = vpack.c.b16 %v80, %v80
    %vm85 = vcmask 257024
    %86 = vst.msk [vmem:[#allocation5] sm:$0xf] %vm85, %v81
    %87 = vst.msk [vmem:[#allocation5 + $0x4] sm:$0xf] %vm85, %v82
    // Predicated region
    $region18: #{tpu_custom_call.1} parent=1 // pred_check
      _
    $region19: #{tpu_custom_call.1} parent=1 // pred_check_branch
      %89 = sbr.rel (0) target = $region21
    $region20: #{tpu_custom_call.1} parent=1 // pred_region
      %s91 = ssub.s32 128, 128
      %92 = vsyncadd [#allocation4], %s91
      %s93 = sshll.u32 [#allocation5], 4
      %s94 = int_to_ptr.vmem [resolvable:$true] %s93
      %99 = dma.vmem_to_hbm [thread:$0]  %s94, 128, %s3, [#allocation4], 64, 64, 4
    $region21: #{tpu_custom_call.1} parent=1 // pred_fallthru
      _
    // Predicated region
    $region22: #{tpu_custom_call.1} parent=1 // pred_check
      _
    $region23: #{tpu_custom_call.1} parent=1 // pred_check_branch
      %101 = sbr.rel (0) target = $region25
    $region24: #{tpu_custom_call.1} parent=1 // pred_region
      %102 = dma.done [#allocation4], 128
    $region25: #{tpu_custom_call.1} parent=1 // pred_fallthru
      _
    %103 = vsyncpa [#allocation3], 1
    %104 = vsyncpa [#allocation4], 1

</llo_original>
